<compile_context>
chip_gen: v7x
topology: tpu7x:2x2x1
jax: 0.10.0
libtpu: 0.0.40
codegen_flags: <defaults>
</compile_context>

<pallas_src>
import math

import jax
import jax.numpy as jnp
from jax.experimental import pallas as pl
from jax.experimental.pallas import tpu as pltpu


_LANE = 128
_SUBLANE = 8
_VMEM_LIMIT = 48 * 1024 * 1024   # explicit scoped-VMEM budget (<= v7x 64 MiB physical)
_GROUP_W_MAX = 8192              # cap on grouped width g*hw (bounds resident 0/1 matrix)
_SPLIT_ST_MAX = 4096             # lane-tile cap on the split-reduction path


def _round_up(a, b):
    return (a + b - 1) // b * b


def _row_tile(budget_rows, n_rows, itemsize):
    """Rows per block: sublane-packed granularity, >= 2 row blocks when possible."""
    gran = max(_SUBLANE, 32 // itemsize)   # 8 for f32, 16 for bf16, 32 for int8
    if n_rows <= gran:
        return n_rows                      # full-dim block
    rt = max(gran, (budget_rows // gran) * gran)
    # Keep at least two row blocks so the "parallel" grid axis can be sharded
    # across both v7x TensorCores (harmless on single-TC v5e/v6e).
    rt = min(rt, _round_up(pl.cdiv(n_rows, 2), gran))
    return rt


def _choose_group(n_rows, hw):
    """Channels per grouped row for the MXU path (power of two, divides n_rows)."""
    g = _LANE // math.gcd(hw, _LANE)       # minimal g with g*hw % 128 == 0
    while g > 1 and g * hw > _GROUP_W_MAX:
        g //= 2                            # bound the resident reduction matrix
    return max(1, math.gcd(n_rows, g))     # must divide n_rows (free reshape)


def _pool_mxu(x2, hw, inv_hw, target_block_bytes):
    """Small hw: MXU segmented sum over grouped, lane-dense rows. x2: (n_rows, hw)."""
    n_rows = x2.shape[0]
    dtype = x2.dtype
    isz = jnp.dtype(dtype).itemsize
    g = _choose_group(n_rows, hw)
    gw = g * hw                            # grouped width = full last dim of the view
    gw_pad = _round_up(gw, _LANE)          # lane-padded width for VMEM accounting
    rows = n_rows // g
    xg = x2.reshape(rows, gw)              # free view of contiguous NCHW

    budget_rows = max(1, target_block_bytes // (gw_pad * isz))
    rt = _row_tile(budget_rows, rows, isz)

    # Block-diagonal 0/1 matrix: column j sums the hw spatial positions of
    # channel j within a group.  Exact in bf16, so the MXU takes it natively.
    r_mat = (jnp.arange(gw, dtype=jnp.int32)[:, None] // hw
             == jnp.arange(g, dtype=jnp.int32)[None, :]).astype(jnp.bfloat16)

    native_bf16 = dtype == jnp.bfloat16

    def kernel(x_ref, r_ref, o_ref):
        xv = x_ref[...]
        r = r_ref[...]
        if native_bf16:
            # bf16 straight into the MXU, f32 accumulation.
            s = jnp.dot(xv, r, preferred_element_type=jnp.float32)
        else:
            # Exact 2-term bf16 split of f32 (the 0/1 RHS is exact in bf16),
            # reduced with two native bf16 MXU passes: ~2^-18 relative error,
            # stays at the HBM roofline on all three generations.
            xv = xv.astype(jnp.float32)
            hi = xv.astype(jnp.bfloat16)
            lo = (xv - hi.astype(jnp.float32)).astype(jnp.bfloat16)
            s = (jnp.dot(hi, r, preferred_element_type=jnp.float32)
                 + jnp.dot(lo, r, preferred_element_type=jnp.float32))
        o_ref[...] = (s * inv_hw).astype(o_ref.dtype)

    out = pl.pallas_call(
        kernel,
        out_shape=jax.ShapeDtypeStruct((rows, g), dtype),
        grid=(pl.cdiv(rows, rt),),
        in_specs=[pl.BlockSpec((rt, gw), lambda i: (i, 0)),
                  pl.BlockSpec((gw, g), lambda i: (0, 0))],   # resident, fetched once
        out_specs=pl.BlockSpec((rt, g), lambda i: (i, 0)),
        compiler_params=pltpu.CompilerParams(
            dimension_semantics=("parallel",),
            vmem_limit_bytes=_VMEM_LIMIT),
    )(xg, r_mat)
    return out.reshape(n_rows)


def _pool_lane_reduce(x2, hw, inv_hw, target_block_bytes):
    """Medium hw, whole spatial extent per block: direct write, no scratch."""
    n_rows = x2.shape[0]
    dtype = x2.dtype
    isz = jnp.dtype(dtype).itemsize
    hw_pad = _round_up(hw, _LANE)
    budget_rows = max(1, target_block_bytes // (hw_pad * isz))
    rt = _row_tile(budget_rows, n_rows, isz)
    needs_cast = dtype != jnp.float32

    def kernel(x_ref, o_ref):
        xv = x_ref[...]
        if needs_cast:
            xv = xv.astype(jnp.float32)
        o_ref[...] = (jnp.sum(xv, axis=-1, keepdims=True) * inv_hw).astype(o_ref.dtype)

    out = pl.pallas_call(
        kernel,
        out_shape=jax.ShapeDtypeStruct((n_rows, 1), dtype),
        grid=(pl.cdiv(n_rows, rt),),
        in_specs=[pl.BlockSpec((rt, hw), lambda i: (i, 0))],
        out_specs=pl.BlockSpec((rt, 1), lambda i: (i, 0)),
        compiler_params=pltpu.CompilerParams(
            dimension_semantics=("parallel",),
            vmem_limit_bytes=_VMEM_LIMIT),
    )(x2)
    return out.reshape(n_rows)


def _pool_split(x2, hw, inv_hw, target_block_bytes):
    """Huge hw: tile the reduction axis; VPU per-lane partial sums in the hot loop."""
    n_rows = x2.shape[0]
    dtype = x2.dtype
    isz = jnp.dtype(dtype).itemsize

    st_max = max(_LANE, (target_block_bytes // (_SUBLANE * isz)) // _LANE * _LANE)
    st = min(_round_up(hw, _LANE), st_max, _SPLIT_ST_MAX)
    # Prefer a spatial tile that divides hw exactly -> no per-step lane masking.
    if hw % st != 0:
        for cand in range(st, _LANE - 1, -_LANE):
            if hw % cand == 0:
                if cand * 4 >= st:          # only if it does not shrink blocks too much
                    st = cand
                break
    mask_spatial = (hw % st) != 0
    n_chunks = st // _LANE

    budget_rows = max(1, target_block_bytes // (st * isz))
    rt = _row_tile(budget_rows, n_rows, isz)
    needs_cast = dtype != jnp.float32

    def kernel(x_ref, o_ref, acc_ref):
        k = pl.program_id(1)

        @pl.when(k == 0)
        def _init():
            acc_ref[...] = jnp.zeros_like(acc_ref)

        xv = x_ref[...]
        if mask_spatial:
            lane = jax.lax.broadcasted_iota(jnp.int32, (xv.shape[0], _LANE), 1)
            limit = hw - k * st             # columns >= limit in this block are padding
        partial = None
        # Pure VPU adds over lane-aligned 128-wide chunks; the single cross-lane
        # reduce happens once per row block in the finalize branch below.
        for cidx in range(n_chunks):
            chunk = xv[:, cidx * _LANE:(cidx + 1) * _LANE]
            if needs_cast:
                chunk = chunk.astype(jnp.float32)
            if mask_spatial:
                chunk = jnp.where(lane < (limit - cidx * _LANE), chunk, 0.0)
            partial = chunk if partial is None else partial + chunk
        acc_ref[...] += partial

        @pl.when(k == pl.num_programs(1) - 1)
        def _finalize():
            o_ref[...] = (jnp.sum(acc_ref[...], axis=-1, keepdims=True)
                          * inv_hw).astype(o_ref.dtype)

    out = pl.pallas_call(
        kernel,
        out_shape=jax.ShapeDtypeStruct((n_rows, 1), dtype),
        grid=(pl.cdiv(n_rows, rt), pl.cdiv(hw, st)),
        in_specs=[pl.BlockSpec((rt, st), lambda i, k: (i, k))],
        out_specs=pl.BlockSpec((rt, 1), lambda i, k: (i, 0)),
        scratch_shapes=[pltpu.VMEM((rt, _LANE), jnp.float32)],
        compiler_params=pltpu.CompilerParams(
            dimension_semantics=("parallel", "arbitrary"),
            vmem_limit_bytes=_VMEM_LIMIT),
    )(x2)
    return out.reshape(n_rows)


def fast_adaptive_avg_pool2d(x, flatten=False, *, target_block_bytes=8 * 1024 * 1024):
    """Mean over the spatial dims of an NCHW tensor (timm FastAdaptiveAvgPool2d)."""
    n, c, h, w = x.shape
    hw = h * w
    n_rows = n * c
    dtype = x.dtype
    isz = jnp.dtype(dtype).itemsize
    inv_hw = 1.0 / float(hw)
    x2 = x.reshape(n_rows, hw)              # free view of contiguous NCHW

    # MXU segmented sum pays off where the XLU lane-reduce would dominate DMA:
    # always for small hw in bf16, and for tiny hw (7x7 / up to ~12x12) in f32.
    mxu_hw_max = 1024 if dtype == jnp.bfloat16 else 160
    if hw <= mxu_hw_max and jnp.issubdtype(dtype, jnp.floating):
        pooled = _pool_mxu(x2, hw, inv_hw, target_block_bytes)
    else:
        hw_pad = _round_up(hw, _LANE)
        if _SUBLANE * hw_pad * isz <= target_block_bytes:
            pooled = _pool_lane_reduce(x2, hw, inv_hw, target_block_bytes)
        else:
            pooled = _pool_split(x2, hw, inv_hw, target_block_bytes)

    pooled = pooled.reshape(n, c)
    return pooled if flatten else pooled.reshape(n, c, 1, 1)


if __name__ == "__main__":
    key = jax.random.PRNGKey(0)
    k1, k2, k3 = jax.random.split(key, 3)

    # 1) Canonical small shape (single-block lane-reduce path): keepdim + flatten.
    x1 = jax.random.normal(k1, (2, 4, 16, 16), dtype=jnp.float32)
    out_keep = jax.block_until_ready(fast_adaptive_avg_pool2d(x1, flatten=False))
    out_flat = jax.block_until_ready(fast_adaptive_avg_pool2d(x1, flatten=True))
    ref1 = jnp.mean(x1, axis=(2, 3))
    assert out_keep.shape == (2, 4, 1, 1)
    assert out_flat.shape == (2, 4)
    assert jnp.allclose(out_keep[:, :, 0, 0], ref1, atol=1e-5)
    assert jnp.allclose(out_flat, ref1, atol=1e-5)

    # 2) 7x7 global pool (MXU grouped-reduction path), f32 and bf16.
    x2 = jax.random.normal(k2, (2, 512, 7, 7), dtype=jnp.float32)
    out2 = jax.block_until_ready(fast_adaptive_avg_pool2d(x2, flatten=True))
    ref2 = jnp.mean(x2, axis=(2, 3))
    assert out2.shape == (2, 512)
    assert jnp.allclose(out2, ref2, atol=5e-5)   # 2x bf16-split reduce: err ~1e-6

    x2b = x2.astype(jnp.bfloat16)
    out2b = jax.block_until_ready(fast_adaptive_avg_pool2d(x2b, flatten=False))
    ref2b = jnp.mean(x2b.astype(jnp.float32), axis=(2, 3), keepdims=True)
    assert out2b.shape == (2, 512, 1, 1)
    assert out2b.dtype == jnp.bfloat16
    assert jnp.allclose(out2b.astype(jnp.float32), ref2b, atol=2e-3)  # final bf16 cast

    # 3) Split-reduction path (forced via a tiny block budget): spatial grid axis,
    #    partial last tile lane-masking, per-lane f32 VPU accumulator.
    x3 = jax.random.normal(k3, (2, 3, 20, 20), dtype=jnp.float32)
    out3 = jax.block_until_ready(
        fast_adaptive_avg_pool2d(x3, flatten=True, target_block_bytes=4096))
    ref3 = jnp.mean(x3, axis=(2, 3))
    assert out3.shape == (2, 3)
    assert jnp.allclose(out3, ref3, atol=1e-5)

    print("KERNEL_OK")
</pallas_src>

<mosaic_0001>
module attributes {stable_mosaic.version = 11 : i64} {
  func.func @kernel(%arg0: i32, %arg1: memref<8x256xf32, #tpu.memory_space<vmem>>, %arg2: memref<8x1xf32, #tpu.memory_space<vmem>>) attributes {dimension_semantics = [#tpu.dimension_semantics<parallel>], iteration_bounds = array<i64: 1>, scalar_prefetch = 0 : i64, scratch_operands = 0 : i64, tpu.core_type = #tpu.core_type<tc>, window_params = [{transform_indices = @transform_0, window_bounds = array<i64: 8, 256>}, {transform_indices = @transform_1, window_bounds = array<i64: 8, 1>}]} {
    %c0 = arith.constant 0 : index
    %c0_0 = arith.constant 0 : index
    %0 = vector.load %arg1[%c0, %c0_0] : memref<8x256xf32, #tpu.memory_space<vmem>>, vector<8x256xf32>
    %cst = arith.constant dense<0.000000e+00> : vector<8xf32>
    %1 = vector.multi_reduction <add>, %0, %cst [1] : vector<8x256xf32> to vector<8xf32>
    %2 = vector.shape_cast %1 : vector<8xf32> to vector<8x1xf32>
    %cst_1 = arith.constant 3.906250e-03 : f32
    %3 = vector.broadcast %cst_1 : f32 to vector<8x1xf32>
    %4 = arith.mulf %2, %3 : vector<8x1xf32>
    %c0_2 = arith.constant 0 : index
    %c0_3 = arith.constant 0 : index
    %5 = vector.load %arg2[%c0_2, %c0_3] : memref<8x1xf32, #tpu.memory_space<vmem>>, vector<8x1xf32>
    tpu.vector_store %arg2[%c0_2, %c0_3], %4 {strides = array<i32>} : memref<8x1xf32, #tpu.memory_space<vmem>>, vector<8x1xf32>,
    return
  }
  func.func @transform_0(%arg0: i32) -> (i32, i32) {
    %c0_i32 = arith.constant 0 : i32
    %c0_i32_0 = arith.constant 0 : i32
    return %arg0, %c0_i32 : i32, i32
  }
  func.func @transform_1(%arg0: i32) -> (i32, i32) {
    %c0_i32 = arith.constant 0 : i32
    %c0_i32_0 = arith.constant 0 : i32
    return %arg0, %c0_i32 : i32, i32
  }
}

</mosaic_0001>

<llo_original>
// kernel: tpu_custom_call.1
$region0: #{tpu_custom_call.1}
  #allocation0 [shape = 'u32[]', space=smem, size = 0x4, offset = 0x4, fixed_abs, tag = 'smem constant byte address 0x4 - core index']
  #allocation1 [shape = 'u32[144,128]{1,0:T(1,128)}', space=vmem, size = 0x12000, scoped, tag = 'internal scratch']
  %s0 = inlined_call_operand.hbm [shape: f32[8,256], index: 0, kind: input, shape index: {}]
  %s1 = inlined_call_operand.vmem [shape: f32[8,1], index: 1, kind: output, shape index: {}]
  %s2 = sld [smem:[#allocation0]]
  $region18: #{tpu_custom_call.1} parent=0
    _
  %s4 = ssub.s32 1, %s2
  %s5 = scalar_select 0, %s4, %s2
  $region1: #{tpu_custom_call.1} parent=0
    #allocation2 [shape = 'u8[8192]{0}', space=vmem, size = 0x2000, scoped, tag = 'input window, operand 0, single buffered']
    #allocation3 [shape = 's32[1]{0}', space=sflag, size = 0x4, scoped, tag = 'scoped memory for tpu_custom_call.1']
    %6 = vsyncpa [#allocation3], 0
    // Predicated region
    $region2: #{tpu_custom_call.1} parent=1 // pred_check
      _
    $region3: #{tpu_custom_call.1} parent=1 // pred_check_branch
      %8 = sbr.rel (0) target = $region5
    $region4: #{tpu_custom_call.1} parent=1 // pred_region
      %s10 = ssub.s32 256, 256
      %11 = vsyncadd [#allocation3], %s10
      %s13 = sshll.u32 [#allocation2], 4
      %s14 = int_to_ptr.vmem [resolvable:$true] %s13
      %16 = dma.hbm_to_vmem [thread:$0]  %s0, 256, %s14, [#allocation3]
    $region5: #{tpu_custom_call.1} parent=1 // pred_fallthru
      _
    // Predicated region
    $region6: #{tpu_custom_call.1} parent=1 // pred_check
      _
    $region7: #{tpu_custom_call.1} parent=1 // pred_check_branch
      %18 = sbr.rel (0) target = $region9
    $region8: #{tpu_custom_call.1} parent=1 // pred_region
      %19 = dma.done [#allocation3], 256
    $region9: #{tpu_custom_call.1} parent=1 // pred_fallthru
      _
    %v20 = vld [vmem:[#allocation2] sm:$0xff]
    %v21 = vld [vmem:[#allocation2 + $0x8] sm:$0xff]
    %v22 = vadd.f32 %v20, %v21
    %23 = vadd.xlane.f32.xlu0 %v22
    %v24 = vpop.xlane.xlu0 %23
    %v25 = vmul.f32 %v24, 0.00390625
    %vm26 = vcmask 7168
    %27 = vst.msk [vmem:[%s1] sm:$0xff] %vm26, %v25
    // Predicated region
    $region10: #{tpu_custom_call.1} parent=1 // pred_check
      _
    $region11: #{tpu_custom_call.1} parent=1 // pred_check_branch
      %29 = sbr.rel (0) target = $region13
    $region12: #{tpu_custom_call.1} parent=1 // pred_region
      _
    $region13: #{tpu_custom_call.1} parent=1 // pred_fallthru
      _
    // Predicated region
    $region14: #{tpu_custom_call.1} parent=1 // pred_check
      _
    $region15: #{tpu_custom_call.1} parent=1 // pred_check_branch
      %31 = sbr.rel (0) target = $region17
    $region16: #{tpu_custom_call.1} parent=1 // pred_region
      _
    $region17: #{tpu_custom_call.1} parent=1 // pred_fallthru
      _
    %32 = vsyncpa [#allocation3], 1

</llo_original>
